<compile_context>
chip_gen: v6e
topology: v6e:2x2x1
jax: 0.10.0
libtpu: 0.0.40
codegen_flags: <defaults>
</compile_context>

<pallas_src>
import functools

import jax
import jax.numpy as jnp
from jax.experimental import pallas as pl
from jax.experimental.pallas import tpu as pltpu


def _round_up(v, m):
    return ((v + m - 1) // m) * m


def _fused_mlp_kernel(x_ref, *refs, num_layers: int):
    """x_ref: (tm, Din) caller dtype; refs = w0, b0, ..., w{L-1}, b{L-1}, o_ref.

    w_i: (K_i, N_i) bf16 (columns 128-padded), b_i: (1, N_i) f32,
    o_ref: (tm, N_{L-1}) in the caller's dtype.  Hidden activations stay in
    vregs between layers; matmuls run on the MXU with f32 accumulation.
    """
    o_ref = refs[-1]
    h = x_ref[...].astype(jnp.bfloat16)                      # in-kernel cast for the MXU
    for i in range(num_layers):
        w = refs[2 * i][...]
        b = refs[2 * i + 1][...]
        acc = jnp.dot(h, w, preferred_element_type=jnp.float32) + b   # f32 acc + bias
        if i < num_layers - 1:
            h = jnp.maximum(acc, 0.0).astype(jnp.bfloat16)   # ReLU in f32, back to bf16
        else:
            o_ref[...] = acc.astype(o_ref.dtype)


def _pack_params(params):
    """Pad/cast weights & biases ONCE: bf16 weights, f32 biases, columns padded
    to multiples of 128 (lane-dense).  The first weight's K dim is left
    unpadded so the activation matrix can be passed to the kernel as-is.
    Zero-padding is numerically inert (zero rows/cols, zero bias, ReLU(0)=0)."""
    packed, shapes = [], []
    prev_out_p = params[0][0].shape[0]          # == input_dim (unpadded K of layer 0)
    for (w, b) in params:
        k, n = w.shape
        k_p = prev_out_p
        n_p = max(128, _round_up(n, 128))
        w_p = jnp.zeros((k_p, n_p), jnp.bfloat16).at[:k, :n].set(w.astype(jnp.bfloat16))
        b_p = jnp.zeros((1, n_p), jnp.float32).at[:, :n].set(
            b.reshape(1, -1).astype(jnp.float32))
        packed += [w_p, b_p]
        shapes.append((k_p, n_p))
        prev_out_p = n_p
    return packed, tuple(shapes)


def make_mlp_forward(params):
    """Build a jitted forward pass; weight packing happens once, here."""
    packed, shapes = _pack_params(params)
    num_layers = len(params)
    input_dim = params[0][0].shape[0]
    output_dim = params[-1][0].shape[1]
    dout_p = shapes[-1][1]
    w_bytes = sum(int(p.size) * p.dtype.itemsize for p in packed)
    kernel = functools.partial(_fused_mlp_kernel, num_layers=num_layers)

    @jax.jit
    def fwd(x, *packed_args):
        lead = x.shape[:-1]
        x2d = x.reshape(-1, input_dim)
        N = x2d.shape[0]
        out_dtype = x.dtype

        if N == 0:                               # static under jit
            return jnp.zeros((*lead, output_dim), out_dtype)

        # Row tiling: single full-extent block for tiny N (legal for any N);
        # otherwise >= 2 tiles of a 16-multiple size (bf16 sublane packing,
        # v7x megacore sharding + input/output pipelining).
        if N <= 32:
            tm = N
        else:
            tm = min(512, max(16, _round_up(pl.cdiv(N, 2), 16)))
        grid = (pl.cdiv(N, tm),)

        in_specs = [pl.BlockSpec((tm, input_dim), lambda i: (i, 0))]
        for (k_p, n_p) in shapes:
            in_specs.append(pl.BlockSpec((k_p, n_p), lambda i: (0, 0)))   # resident weight
            in_specs.append(pl.BlockSpec((1, n_p), lambda i: (0, 0)))     # resident bias
        out_specs = pl.BlockSpec((tm, dout_p), lambda i: (i, 0))

        # VMEM budget: (double-buffered) resident weights + double-buffered row
        # tiles + intermediate working set, capped at ~80% of physical VMEM.
        x_isz = jnp.dtype(x.dtype).itemsize
        o_isz = jnp.dtype(out_dtype).itemsize
        act_bytes = 2 * tm * input_dim * x_isz + 2 * tm * dout_p * o_isz
        work_bytes = 2 * tm * max(n_p for (_, n_p) in shapes) * 4
        need = 2 * w_bytes + act_bytes + work_bytes
        try:
            phys = int(pltpu.get_tpu_info().vmem_capacity_bytes)
        except Exception:
            phys = 64 << 20                      # conservative: v7x per-core VMEM
        vmem_limit = int(min(int(phys * 0.8), max(32 << 20, 2 * need)))

        out_p = pl.pallas_call(
            kernel,
            out_shape=jax.ShapeDtypeStruct((N, dout_p), out_dtype),
            grid_spec=pltpu.PrefetchScalarGridSpec(
                num_scalar_prefetch=0,
                grid=grid,
                in_specs=in_specs,
                out_specs=out_specs,
            ),
            compiler_params=pltpu.CompilerParams(
                dimension_semantics=("parallel",),
                vmem_limit_bytes=vmem_limit,
            ),
        )(x2d, *packed_args)

        return out_p[:, :output_dim].reshape(*lead, output_dim)

    return lambda x: fwd(x, *packed)


def init_mlp_params(key, input_dim, hidden_dim, output_dim, num_layers):
    """Synthetic init matching nn.Linear shapes (kept as [in, out] / [out])."""
    h = [hidden_dim] * (num_layers - 1)
    dims_in = [input_dim] + h
    dims_out = h + [output_dim]
    params = []
    for n, k in zip(dims_in, dims_out):
        key, kw, kb = jax.random.split(key, 3)
        bound = 1.0 / jnp.sqrt(n)                # PyTorch default Linear init bound
        w = jax.random.uniform(kw, (n, k), jnp.float32, -bound, bound)
        b = jax.random.uniform(kb, (k,), jnp.float32, -bound, bound)
        params.append((w, b))
    return params


def mlp_reference(x, params):
    """Plain-JAX f32 reference mirroring the PyTorch forward."""
    num_layers = len(params)
    for i, (w, b) in enumerate(params):
        x = x @ w + b
        if i < num_layers - 1:
            x = jax.nn.relu(x)
    return x


if __name__ == "__main__":
    # DETR MLP-head-like shapes: [batch, queries, input_dim].
    batch, queries = 2, 8
    input_dim, hidden_dim, output_dim, num_layers = 32, 64, 4, 3

    key = jax.random.PRNGKey(0)
    kx, kp = jax.random.split(key)
    x = jax.random.normal(kx, (batch, queries, input_dim), jnp.float32)
    params = init_mlp_params(kp, input_dim, hidden_dim, output_dim, num_layers)

    mlp = make_mlp_forward(params)

    out = jax.block_until_ready(mlp(x))
    ref = mlp_reference(x, params)
    assert out.shape == (batch, queries, output_dim)
    assert out.dtype == x.dtype
    # bf16 MXU matmul with f32 accumulation -> relaxed tolerance vs f32 reference.
    assert jnp.allclose(out, ref, atol=2e-2, rtol=2e-2)

    # Second shape: N = 75 rows exercises the multi-tile grid (>=2 row tiles,
    # masked partial last tile).
    kx2, _ = jax.random.split(kx)
    x2 = jax.random.normal(kx2, (3, 25, input_dim), jnp.float32)
    out2 = jax.block_until_ready(mlp(x2))
    ref2 = mlp_reference(x2, params)
    assert out2.shape == (3, 25, output_dim)
    assert jnp.allclose(out2, ref2, atol=2e-2, rtol=2e-2)

    print("KERNEL_OK")
</pallas_src>

<mosaic_0001>
module attributes {stable_mosaic.version = 11 : i64} {
  func.func @_fused_mlp_kernel(%arg0: i32, %arg1: memref<16x32xf32, #tpu.memory_space<vmem>>, %arg2: memref<32x128xbf16, #tpu.memory_space<vmem>>, %arg3: memref<1x128xf32, #tpu.memory_space<vmem>>, %arg4: memref<128x128xbf16, #tpu.memory_space<vmem>>, %arg5: memref<1x128xf32, #tpu.memory_space<vmem>>, %arg6: memref<128x128xbf16, #tpu.memory_space<vmem>>, %arg7: memref<1x128xf32, #tpu.memory_space<vmem>>, %arg8: memref<16x128xf32, #tpu.memory_space<vmem>>) attributes {dimension_semantics = [#tpu.dimension_semantics<parallel>], iteration_bounds = array<i64: 1>, scalar_prefetch = 0 : i64, scratch_operands = 0 : i64, tpu.core_type = #tpu.core_type<tc>, window_params = [{transform_indices = @transform_0, window_bounds = array<i64: 16, 32>}, {pipeline_mode = #tpu.pipeline_mode<synchronous>, transform_indices = @transform_1, window_bounds = array<i64: 32, 128>}, {pipeline_mode = #tpu.pipeline_mode<synchronous>, transform_indices = @transform_2, window_bounds = array<i64: 1, 128>}, {pipeline_mode = #tpu.pipeline_mode<synchronous>, transform_indices = @transform_3, window_bounds = array<i64: 128, 128>}, {pipeline_mode = #tpu.pipeline_mode<synchronous>, transform_indices = @transform_4, window_bounds = array<i64: 1, 128>}, {pipeline_mode = #tpu.pipeline_mode<synchronous>, transform_indices = @transform_5, window_bounds = array<i64: 128, 128>}, {pipeline_mode = #tpu.pipeline_mode<synchronous>, transform_indices = @transform_6, window_bounds = array<i64: 1, 128>}, {transform_indices = @transform_7, window_bounds = array<i64: 16, 128>}]} {
    %c0 = arith.constant 0 : index
    %c0_0 = arith.constant 0 : index
    %0 = vector.load %arg1[%c0, %c0_0] : memref<16x32xf32, #tpu.memory_space<vmem>>, vector<16x32xf32>
    %1 = arith.truncf %0 : vector<16x32xf32> to vector<16x32xbf16>
    %c0_1 = arith.constant 0 : index
    %c0_2 = arith.constant 0 : index
    %2 = vector.load %arg2[%c0_1, %c0_2] : memref<32x128xbf16, #tpu.memory_space<vmem>>, vector<32x128xbf16>
    %c0_3 = arith.constant 0 : index
    %c0_4 = arith.constant 0 : index
    %3 = vector.load %arg3[%c0_3, %c0_4] : memref<1x128xf32, #tpu.memory_space<vmem>>, vector<1x128xf32>
    %cst = arith.constant dense<0.000000e+00> : vector<16x128xf32>
    %4 = tpu.matmul %1, %2, %cst {dimension_numbers = #tpu.dot_dimension_numbers<[1], [0], [0], [1], [0, 0, 1, 1], [], []>} : vector<16x32xbf16>, vector<32x128xbf16>, vector<16x128xf32> -> vector<16x128xf32>
    %5 = vector.broadcast %3 : vector<1x128xf32> to vector<16x128xf32>
    %6 = arith.addf %4, %5 : vector<16x128xf32>
    %cst_5 = arith.constant 0.000000e+00 : f32
    %7 = vector.broadcast %cst_5 : f32 to vector<16x128xf32>
    %8 = arith.maximumf %6, %7 : vector<16x128xf32>
    %9 = arith.truncf %8 : vector<16x128xf32> to vector<16x128xbf16>
    %c0_6 = arith.constant 0 : index
    %c0_7 = arith.constant 0 : index
    %10 = vector.load %arg4[%c0_6, %c0_7] : memref<128x128xbf16, #tpu.memory_space<vmem>>, vector<128x128xbf16>
    %c0_8 = arith.constant 0 : index
    %c0_9 = arith.constant 0 : index
    %11 = vector.load %arg5[%c0_8, %c0_9] : memref<1x128xf32, #tpu.memory_space<vmem>>, vector<1x128xf32>
    %cst_10 = arith.constant dense<0.000000e+00> : vector<16x128xf32>
    %12 = tpu.matmul %9, %10, %cst_10 {dimension_numbers = #tpu.dot_dimension_numbers<[1], [0], [0], [1], [0, 0, 1, 1], [], []>} : vector<16x128xbf16>, vector<128x128xbf16>, vector<16x128xf32> -> vector<16x128xf32>
    %13 = vector.broadcast %11 : vector<1x128xf32> to vector<16x128xf32>
    %14 = arith.addf %12, %13 : vector<16x128xf32>
    %cst_11 = arith.constant 0.000000e+00 : f32
    %15 = vector.broadcast %cst_11 : f32 to vector<16x128xf32>
    %16 = arith.maximumf %14, %15 : vector<16x128xf32>
    %17 = arith.truncf %16 : vector<16x128xf32> to vector<16x128xbf16>
    %c0_12 = arith.constant 0 : index
    %c0_13 = arith.constant 0 : index
    %18 = vector.load %arg6[%c0_12, %c0_13] : memref<128x128xbf16, #tpu.memory_space<vmem>>, vector<128x128xbf16>
    %c0_14 = arith.constant 0 : index
    %c0_15 = arith.constant 0 : index
    %19 = vector.load %arg7[%c0_14, %c0_15] : memref<1x128xf32, #tpu.memory_space<vmem>>, vector<1x128xf32>
    %cst_16 = arith.constant dense<0.000000e+00> : vector<16x128xf32>
    %20 = tpu.matmul %17, %18, %cst_16 {dimension_numbers = #tpu.dot_dimension_numbers<[1], [0], [0], [1], [0, 0, 1, 1], [], []>} : vector<16x128xbf16>, vector<128x128xbf16>, vector<16x128xf32> -> vector<16x128xf32>
    %21 = vector.broadcast %19 : vector<1x128xf32> to vector<16x128xf32>
    %22 = arith.addf %20, %21 : vector<16x128xf32>
    %c0_17 = arith.constant 0 : index
    %c0_18 = arith.constant 0 : index
    %23 = vector.load %arg8[%c0_17, %c0_18] : memref<16x128xf32, #tpu.memory_space<vmem>>, vector<16x128xf32>
    tpu.vector_store %arg8[%c0_17, %c0_18], %22 {strides = array<i32>} : memref<16x128xf32, #tpu.memory_space<vmem>>, vector<16x128xf32>,
    return
  }
  func.func @transform_0(%arg0: i32) -> (i32, i32) {
    %c0_i32 = arith.constant 0 : i32
    %c0_i32_0 = arith.constant 0 : i32
    return %arg0, %c0_i32 : i32, i32
  }
  func.func @transform_1(%arg0: i32) -> (i32, i32) {
    %c0_i32 = arith.constant 0 : i32
    %c0_i32_0 = arith.constant 0 : i32
    %c0_i32_1 = arith.constant 0 : i32
    return %c0_i32, %c0_i32_0 : i32, i32
  }
  func.func @transform_2(%arg0: i32) -> (i32, i32) {
    %c0_i32 = arith.constant 0 : i32
    %c0_i32_0 = arith.constant 0 : i32
    %c0_i32_1 = arith.constant 0 : i32
    return %c0_i32, %c0_i32_0 : i32, i32
  }
  func.func @transform_3(%arg0: i32) -> (i32, i32) {
    %c0_i32 = arith.constant 0 : i32
    %c0_i32_0 = arith.constant 0 : i32
    %c0_i32_1 = arith.constant 0 : i32
    return %c0_i32, %c0_i32_0 : i32, i32
  }
  func.func @transform_4(%arg0: i32) -> (i32, i32) {
    %c0_i32 = arith.constant 0 : i32
    %c0_i32_0 = arith.constant 0 : i32
    %c0_i32_1 = arith.constant 0 : i32
    return %c0_i32, %c0_i32_0 : i32, i32
  }
  func.func @transform_5(%arg0: i32) -> (i32, i32) {
    %c0_i32 = arith.constant 0 : i32
    %c0_i32_0 = arith.constant 0 : i32
    %c0_i32_1 = arith.constant 0 : i32
    return %c0_i32, %c0_i32_0 : i32, i32
  }
  func.func @transform_6(%arg0: i32) -> (i32, i32) {
    %c0_i32 = arith.constant 0 : i32
    %c0_i32_0 = arith.constant 0 : i32
    %c0_i32_1 = arith.constant 0 : i32
    return %c0_i32, %c0_i32_0 : i32, i32
  }
  func.func @transform_7(%arg0: i32) -> (i32, i32) {
    %c0_i32 = arith.constant 0 : i32
    %c0_i32_0 = arith.constant 0 : i32
    return %arg0, %c0_i32 : i32, i32
  }
}

</mosaic_0001>

<llo_original>
// kernel: fwd.1
$region0: #{fwd.1}
  #allocation0 [shape = 'u32[]', space=smem, size = 0x4, offset = 0x4, fixed_abs, tag = 'smem constant byte address 0x4 - core index']
  #allocation1 [shape = 'u32[144,128]{1,0:T(1,128)}', space=vmem, size = 0x12000, scoped, tag = 'internal scratch']
  %s0 = inlined_call_operand.hbm [shape: f32[16,32], index: 0, kind: input, shape index: {}]
  %s1 = inlined_call_operand.hbm [shape: bf16[32,128], index: 1, kind: input, shape index: {}]
  %s2 = inlined_call_operand.vmem [shape: f32[1,128], index: 2, kind: input, shape index: {}]
  %s3 = inlined_call_operand.hbm [shape: bf16[128,128], index: 3, kind: input, shape index: {}]
  %s4 = inlined_call_operand.vmem [shape: f32[1,128], index: 4, kind: input, shape index: {}]
  %s5 = inlined_call_operand.hbm [shape: bf16[128,128], index: 5, kind: input, shape index: {}]
  %s6 = inlined_call_operand.vmem [shape: f32[1,128], index: 6, kind: input, shape index: {}]
  %s7 = inlined_call_operand.vmem [shape: f32[16,128], index: 7, kind: output, shape index: {}]
  %s8 = sld [smem:[#allocation0]]
  $region54: #{fwd.1} parent=0
    _
  %s10 = ssub.s32 1, %s8
  %s11 = scalar_select 0, %s10, %s8
  $region1: #{fwd.1} parent=0
    #allocation2 [shape = 'u8[8192]{0}', space=vmem, size = 0x2000, scoped, tag = 'input window, operand 0, single buffered']
    #allocation3 [shape = 's32[1]{0}', space=sflag, size = 0x4, scoped, tag = 'scoped memory for fwd.1']
    #allocation4 [shape = 'u8[8192]{0}', space=vmem, size = 0x2000, scoped, tag = 'input window, operand 1, single buffered']
    #allocation5 [shape = 's32[1]{0}', space=sflag, size = 0x4, scoped, tag = 'scoped memory for fwd.1']
    #allocation6 [shape = 'u8[32768]{0}', space=vmem, size = 0x8000, scoped, tag = 'input window, operand 3, single buffered']
    #allocation7 [shape = 'u8[32768]{0}', space=vmem, size = 0x8000, scoped, tag = 'input window, operand 5, single buffered']
    #allocation8 [shape = 's32[1]{0}', space=sflag, size = 0x4, scoped, tag = 'scoped memory for fwd.1']
    %12 = vsyncpa [#allocation3], 0
    %13 = vsyncpa [#allocation5], 0
    %14 = vsyncpa [#allocation8], 0
    // Predicated region
    $region2: #{fwd.1} parent=1 // pred_check
      _
    $region3: #{fwd.1} parent=1 // pred_check_branch
      %16 = sbr.rel (0) target = $region5
    $region4: #{fwd.1} parent=1 // pred_region
      %s18 = ssub.s32 256, 256
      %19 = vsyncadd [#allocation3], %s18
      %s20 = sshll.u32 [#allocation2], 4
      %s21 = int_to_ptr.vmem [resolvable:$true] %s20
      %26 = dma.hbm_to_vmem [thread:$0]  %s0, 256, %s21, [#allocation3], 128, 128, 8
    $region5: #{fwd.1} parent=1 // pred_fallthru
      _
    // Predicated region
    $region6: #{fwd.1} parent=1 // pred_check
      _
    $region7: #{fwd.1} parent=1 // pred_check_branch
      %28 = sbr.rel (0) target = $region9
    $region8: #{fwd.1} parent=1 // pred_region
      %s30 = ssub.s32 256, 256
      %31 = vsyncadd [#allocation5], %s30
      %s32 = sshll.u32 [#allocation4], 4
      %s33 = int_to_ptr.vmem [resolvable:$true] %s32
      %38 = dma.hbm_to_vmem [thread:$0]  %s1, 256, %s33, [#allocation5], 64, 64, 4
    $region9: #{fwd.1} parent=1 // pred_fallthru
      _
    // Predicated region
    $region10: #{fwd.1} parent=1 // pred_check
      _
    $region11: #{fwd.1} parent=1 // pred_check_branch
      %40 = sbr.rel (0) target = $region13
    $region12: #{fwd.1} parent=1 // pred_region
      _
    $region13: #{fwd.1} parent=1 // pred_fallthru
      _
    // Predicated region
    $region14: #{fwd.1} parent=1 // pred_check
      _
    $region15: #{fwd.1} parent=1 // pred_check_branch
      %42 = sbr.rel (0) target = $region17
    $region16: #{fwd.1} parent=1 // pred_region
      %s44 = ssub.s32 1024, 1024
      %45 = vsyncadd [#allocation5], %s44
      %s46 = sshll.u32 [#allocation6], 4
      %s47 = int_to_ptr.vmem [resolvable:$true] %s46
      %52 = dma.hbm_to_vmem [thread:$0]  %s3, 1024, %s47, [#allocation5], 64, 64, 4
    $region17: #{fwd.1} parent=1 // pred_fallthru
      _
    // Predicated region
    $region18: #{fwd.1} parent=1 // pred_check
      _
    $region19: #{fwd.1} parent=1 // pred_check_branch
      %54 = sbr.rel (0) target = $region21
    $region20: #{fwd.1} parent=1 // pred_region
      _
    $region21: #{fwd.1} parent=1 // pred_fallthru
      _
    // Predicated region
    $region22: #{fwd.1} parent=1 // pred_check
      _
    $region23: #{fwd.1} parent=1 // pred_check_branch
      %56 = sbr.rel (0) target = $region25
    $region24: #{fwd.1} parent=1 // pred_region
      %s58 = ssub.s32 1024, 1024
      %59 = vsyncadd [#allocation8], %s58
      %s60 = sshll.u32 [#allocation7], 4
      %s61 = int_to_ptr.vmem [resolvable:$true] %s60
      %66 = dma.hbm_to_vmem [thread:$0]  %s5, 1024, %s61, [#allocation8], 64, 64, 4
    $region25: #{fwd.1} parent=1 // pred_fallthru
      _
    // Predicated region
    $region26: #{fwd.1} parent=1 // pred_check
      _
    $region27: #{fwd.1} parent=1 // pred_check_branch
      %68 = sbr.rel (0) target = $region29
    $region28: #{fwd.1} parent=1 // pred_region
      _
    $region29: #{fwd.1} parent=1 // pred_fallthru
      _
    // Predicated region
    $region30: #{fwd.1} parent=1 // pred_check
      _
    $region31: #{fwd.1} parent=1 // pred_check_branch
      %70 = sbr.rel (0) target = $region33
    $region32: #{fwd.1} parent=1 // pred_region
      %71 = dma.done [#allocation3], 256
    $region33: #{fwd.1} parent=1 // pred_fallthru
      _
    // Predicated region
    $region34: #{fwd.1} parent=1 // pred_check
      _
    $region35: #{fwd.1} parent=1 // pred_check_branch
      %73 = sbr.rel (0) target = $region37
    $region36: #{fwd.1} parent=1 // pred_region
      %74 = dma.done [#allocation5], 256
    $region37: #{fwd.1} parent=1 // pred_fallthru
      _
    // Predicated region
    $region38: #{fwd.1} parent=1 // pred_check
      _
    $region39: #{fwd.1} parent=1 // pred_check_branch
      %76 = sbr.rel (0) target = $region41
    $region40: #{fwd.1} parent=1 // pred_region
      %77 = dma.done [#allocation5], 1024
    $region41: #{fwd.1} parent=1 // pred_fallthru
      _
    // Predicated region
    $region42: #{fwd.1} parent=1 // pred_check
      _
    $region43: #{fwd.1} parent=1 // pred_check_branch
      %79 = sbr.rel (0) target = $region45
    $region44: #{fwd.1} parent=1 // pred_region
      %80 = dma.done [#allocation8], 1024
    $region45: #{fwd.1} parent=1 // pred_fallthru
      _
    %v82 = vld [vmem:[#allocation2] sm:$0xff]
    %v83 = vld [vmem:[#allocation2 + $0x8] sm:$0xff]
    %v84 = vpack.c.bf16 %v83, %v82
    %v85 = vld [vmem:[#allocation4] sm:$0xf]
    %v86 = vld [vmem:[#allocation4 + $0x4] sm:$0xf]
    %v87 = vld [vmem:[#allocation4 + $0x8] sm:$0xf]
    %v88 = vld [vmem:[#allocation4 + $0xc] sm:$0xf]
    %v89 = vld [vmem:[%s2] sm:$0x1]
    %v91 = vlaneseq
    %v92 = vshrl.u32 %v91, 7
    %v93 = vsub.s32 0, %v92
    %v94 = vrot.slane %v89, %v93
    %v100 = vunpack.c.l.b16 %v85
    %v101 = vunpack.c.l.b16 %v86
    %v102 = vunpack.c.l.b16 %v87
    %v103 = vunpack.c.l.b16 %v88
    %v104 = vpack.c.b16 %v101, %v100
    %v105 = vpack.c.b16 %v103, %v102
    %vm108 = vcmask 261120
    %v110 = vsel %vm108, %v84, 0
    %112 = vmatprep.subr.bf16.mxu0 0
    %113 = vmatpush1.bf16.msra.mxu0 0
    %114 = vmatprep.subr.bf16.mxu0 0
    %115 = vmatpush1.bf16.msra.mxu0 0
    %116 = vmatprep.subr.bf16.mxu0 0
    %117 = vmatpush1.bf16.msra.mxu0 0
    %118 = vmatprep.subr.bf16.mxu0 0
    %119 = vmatpush1.bf16.msra.mxu0 0
    %120 = vmatprep.subr.bf16.mxu0 0
    %121 = vmatpush1.bf16.msra.mxu0 0
    %122 = vmatprep.subr.bf16.mxu0 0
    %123 = vmatpush1.bf16.msra.mxu0 0
    %124 = vmatprep.subr.bf16.mxu0 0
    %125 = vmatpush1.bf16.msra.mxu0 %v105
    %126 = vmatprep.subr.bf16.mxu0 0
    %127 = vmatpush1.bf16.msra.mxu0 %v104
    %128 = vmatprep.subr.bf16.mxu0 0
    %129 = vmatpush2.bf16.msra.mxu0 0
    %130 = vmatprep.subr.bf16.mxu0 0
    %131 = vmatpush2.bf16.msra.mxu0 0
    %132 = vmatprep.subr.bf16.mxu0 0
    %133 = vmatpush2.bf16.msra.mxu0 0
    %134 = vmatprep.subr.bf16.mxu0 0
    %135 = vmatpush2.bf16.msra.mxu0 0
    %136 = vmatprep.subr.bf16.mxu0 0
    %137 = vmatpush2.bf16.msra.mxu0 0
    %138 = vmatprep.subr.bf16.mxu0 0
    %139 = vmatpush2.bf16.msra.mxu0 0
    %140 = vmatprep.subr.bf16.mxu0 0
    %141 = vmatpush2.bf16.msra.mxu0 0
    %142 = vmatprep.subr.bf16.mxu0 0
    %143 = vmatpush2.bf16.msra.mxu0 0
    %144 = vmatprep.mubr.bf16.mxu0 0
    %145 = vmatmul.mubr.bf16.gmra.mxu0 %v110
    %v146 = vpop.f32.mrf.mxu0
    %v147 = vadd.f32 %v94, %v146
    %v148 = vpop.f32.mrf.mxu0
    %v149 = vpop.f32.mrf.mxu0
    %v150 = vadd.f32 %v94, %v149
    %v151 = vpop.f32.mrf.mxu0
    %152 = vdwg.mxu0
    %v153 = vmax.f32 %v147, 0.0
    %v154 = vmax.f32 %v150, 0.0
    %v155 = vpack.c.bf16 %v154, %v153
    %v156 = vld [vmem:[#allocation6] sm:$0xf]
    %v157 = vld [vmem:[#allocation6 + $0x4] sm:$0xf]
    %v158 = vld [vmem:[#allocation6 + $0x8] sm:$0xf]
    %v159 = vld [vmem:[#allocation6 + $0xc] sm:$0xf]
    %v160 = vld [vmem:[#allocation6 + $0x10] sm:$0xf]
    %v161 = vld [vmem:[#allocation6 + $0x14] sm:$0xf]
    %v162 = vld [vmem:[#allocation6 + $0x18] sm:$0xf]
    %v163 = vld [vmem:[#allocation6 + $0x1c] sm:$0xf]
    %v164 = vld [vmem:[#allocation6 + $0x20] sm:$0xf]
    %v165 = vld [vmem:[#allocation6 + $0x24] sm:$0xf]
    %v166 = vld [vmem:[#allocation6 + $0x28] sm:$0xf]
    %v167 = vld [vmem:[#allocation6 + $0x2c] sm:$0xf]
    %v168 = vld [vmem:[#allocation6 + $0x30] sm:$0xf]
    %v169 = vld [vmem:[#allocation6 + $0x34] sm:$0xf]
    %v170 = vld [vmem:[#allocation6 + $0x38] sm:$0xf]
    %v171 = vld [vmem:[#allocation6 + $0x3c] sm:$0xf]
    %v172 = vld [vmem:[%s4] sm:$0x1]
    %v174 = vlaneseq
    %v175 = vshrl.u32 %v174, 7
    %v176 = vsub.s32 0, %v175
    %v177 = vrot.slane %v172, %v176
    %v195 = vunpack.c.l.b16 %v156
    %v196 = vunpack.c.l.b16 %v157
    %v197 = vunpack.c.l.b16 %v158
    %v198 = vunpack.c.l.b16 %v159
    %v199 = vunpack.c.l.b16 %v160
    %v200 = vunpack.c.l.b16 %v161
    %v201 = vunpack.c.l.b16 %v162
    %v202 = vunpack.c.l.b16 %v163
    %v203 = vunpack.c.l.b16 %v164
    %v204 = vunpack.c.l.b16 %v165
    %v205 = vunpack.c.l.b16 %v166
    %v206 = vunpack.c.l.b16 %v167
    %v207 = vunpack.c.l.b16 %v168
    %v208 = vunpack.c.l.b16 %v169
    %v209 = vunpack.c.l.b16 %v170
    %v210 = vunpack.c.l.b16 %v171
    %v211 = vpack.c.b16 %v196, %v195
    %v212 = vpack.c.b16 %v198, %v197
    %v213 = vpack.c.b16 %v200, %v199
    %v214 = vpack.c.b16 %v202, %v201
    %v215 = vpack.c.b16 %v204, %v203
    %v216 = vpack.c.b16 %v206, %v205
    %v217 = vpack.c.b16 %v208, %v207
    %v218 = vpack.c.b16 %v210, %v209
    %227 = vmatprep.subr.bf16.mxu0 0
    %228 = vmatpush1.bf16.msra.mxu0 %v218
    %229 = vmatprep.subr.bf16.mxu0 0
    %230 = vmatpush1.bf16.msra.mxu0 %v217
    %231 = vmatprep.subr.bf16.mxu0 0
    %232 = vmatpush1.bf16.msra.mxu0 %v216
    %233 = vmatprep.subr.bf16.mxu0 0
    %234 = vmatpush1.bf16.msra.mxu0 %v215
    %235 = vmatprep.subr.bf16.mxu0 0
    %236 = vmatpush1.bf16.msra.mxu0 %v214
    %237 = vmatprep.subr.bf16.mxu0 0
    %238 = vmatpush1.bf16.msra.mxu0 %v213
    %239 = vmatprep.subr.bf16.mxu0 0
    %240 = vmatpush1.bf16.msra.mxu0 %v212
    %241 = vmatprep.subr.bf16.mxu0 0
    %242 = vmatpush1.bf16.msra.mxu0 %v211
    %243 = vmatprep.subr.bf16.mxu0 0
    %244 = vmatpush2.bf16.msra.mxu0 0
    %245 = vmatprep.subr.bf16.mxu0 0
    %246 = vmatpush2.bf16.msra.mxu0 0
    %247 = vmatprep.subr.bf16.mxu0 0
    %248 = vmatpush2.bf16.msra.mxu0 0
    %249 = vmatprep.subr.bf16.mxu0 0
    %250 = vmatpush2.bf16.msra.mxu0 0
    %251 = vmatprep.subr.bf16.mxu0 0
    %252 = vmatpush2.bf16.msra.mxu0 0
    %253 = vmatprep.subr.bf16.mxu0 0
    %254 = vmatpush2.bf16.msra.mxu0 0
    %255 = vmatprep.subr.bf16.mxu0 0
    %256 = vmatpush2.bf16.msra.mxu0 0
    %257 = vmatprep.subr.bf16.mxu0 0
    %258 = vmatpush2.bf16.msra.mxu0 0
    %259 = vmatprep.mubr.bf16.mxu0 0
    %260 = vmatmul.mubr.bf16.gmra.mxu0 %v155
    %v261 = vpop.f32.mrf.mxu0
    %v262 = vadd.f32 %v177, %v261
    %v263 = vpop.f32.mrf.mxu0
    %v264 = vpop.f32.mrf.mxu0
    %v265 = vadd.f32 %v177, %v264
    %v266 = vpop.f32.mrf.mxu0
    %267 = vdwg.mxu0
    %v268 = vmax.f32 %v262, 0.0
    %v269 = vmax.f32 %v265, 0.0
    %v270 = vpack.c.bf16 %v269, %v268
    %v271 = vld [vmem:[#allocation7] sm:$0xf]
    %v272 = vld [vmem:[#allocation7 + $0x4] sm:$0xf]
    %v273 = vld [vmem:[#allocation7 + $0x8] sm:$0xf]
    %v274 = vld [vmem:[#allocation7 + $0xc] sm:$0xf]
    %v275 = vld [vmem:[#allocation7 + $0x10] sm:$0xf]
    %v276 = vld [vmem:[#allocation7 + $0x14] sm:$0xf]
    %v277 = vld [vmem:[#allocation7 + $0x18] sm:$0xf]
    %v278 = vld [vmem:[#allocation7 + $0x1c] sm:$0xf]
    %v279 = vld [vmem:[#allocation7 + $0x20] sm:$0xf]
    %v280 = vld [vmem:[#allocation7 + $0x24] sm:$0xf]
    %v281 = vld [vmem:[#allocation7 + $0x28] sm:$0xf]
    %v282 = vld [vmem:[#allocation7 + $0x2c] sm:$0xf]
    %v283 = vld [vmem:[#allocation7 + $0x30] sm:$0xf]
    %v284 = vld [vmem:[#allocation7 + $0x34] sm:$0xf]
    %v285 = vld [vmem:[#allocation7 + $0x38] sm:$0xf]
    %v286 = vld [vmem:[#allocation7 + $0x3c] sm:$0xf]
    %v287 = vld [vmem:[%s6] sm:$0x1]
    %v289 = vlaneseq
    %v290 = vshrl.u32 %v289, 7
    %v291 = vsub.s32 0, %v290
    %v292 = vrot.slane %v287, %v291
    %v310 = vunpack.c.l.b16 %v271
    %v311 = vunpack.c.l.b16 %v272
    %v312 = vunpack.c.l.b16 %v273
    %v313 = vunpack.c.l.b16 %v274
    %v314 = vunpack.c.l.b16 %v275
    %v315 = vunpack.c.l.b16 %v276
    %v316 = vunpack.c.l.b16 %v277
    %v317 = vunpack.c.l.b16 %v278
    %v318 = vunpack.c.l.b16 %v279
    %v319 = vunpack.c.l.b16 %v280
    %v320 = vunpack.c.l.b16 %v281
    %v321 = vunpack.c.l.b16 %v282
    %v322 = vunpack.c.l.b16 %v283
    %v323 = vunpack.c.l.b16 %v284
    %v324 = vunpack.c.l.b16 %v285
    %v325 = vunpack.c.l.b16 %v286
    %v326 = vpack.c.b16 %v311, %v310
    %v327 = vpack.c.b16 %v313, %v312
    %v328 = vpack.c.b16 %v315, %v314
    %v329 = vpack.c.b16 %v317, %v316
    %v330 = vpack.c.b16 %v319, %v318
    %v331 = vpack.c.b16 %v321, %v320
    %v332 = vpack.c.b16 %v323, %v322
    %v333 = vpack.c.b16 %v325, %v324
    %342 = vmatprep.subr.bf16.mxu0 0
    %343 = vmatpush1.bf16.msra.mxu0 %v333
    %344 = vmatprep.subr.bf16.mxu0 0
    %345 = vmatpush1.bf16.msra.mxu0 %v332
    %346 = vmatprep.subr.bf16.mxu0 0
    %347 = vmatpush1.bf16.msra.mxu0 %v331
    %348 = vmatprep.subr.bf16.mxu0 0
    %349 = vmatpush1.bf16.msra.mxu0 %v330
    %350 = vmatprep.subr.bf16.mxu0 0
    %351 = vmatpush1.bf16.msra.mxu0 %v329
    %352 = vmatprep.subr.bf16.mxu0 0
    %353 = vmatpush1.bf16.msra.mxu0 %v328
    %354 = vmatprep.subr.bf16.mxu0 0
    %355 = vmatpush1.bf16.msra.mxu0 %v327
    %356 = vmatprep.subr.bf16.mxu0 0
    %357 = vmatpush1.bf16.msra.mxu0 %v326
    %358 = vmatprep.subr.bf16.mxu0 0
    %359 = vmatpush2.bf16.msra.mxu0 0
    %360 = vmatprep.subr.bf16.mxu0 0
    %361 = vmatpush2.bf16.msra.mxu0 0
    %362 = vmatprep.subr.bf16.mxu0 0
    %363 = vmatpush2.bf16.msra.mxu0 0
    %364 = vmatprep.subr.bf16.mxu0 0
    %365 = vmatpush2.bf16.msra.mxu0 0
    %366 = vmatprep.subr.bf16.mxu0 0
    %367 = vmatpush2.bf16.msra.mxu0 0
    %368 = vmatprep.subr.bf16.mxu0 0
    %369 = vmatpush2.bf16.msra.mxu0 0
    %370 = vmatprep.subr.bf16.mxu0 0
    %371 = vmatpush2.bf16.msra.mxu0 0
    %372 = vmatprep.subr.bf16.mxu0 0
    %373 = vmatpush2.bf16.msra.mxu0 0
    %374 = vmatprep.mubr.bf16.mxu0 0
    %375 = vmatmul.mubr.bf16.gmra.mxu0 %v270
    %v376 = vpop.f32.mrf.mxu0
    %v377 = vadd.f32 %v292, %v376
    %v378 = vpop.f32.mrf.mxu0
    %v379 = vpop.f32.mrf.mxu0
    %v380 = vadd.f32 %v292, %v379
    %v381 = vpop.f32.mrf.mxu0
    %382 = vdwg.mxu0
    %383 = vst [vmem:[%s7] sm:$0xff] %v377
    %384 = vst [vmem:[%s7 + $0x8] sm:$0xff] %v380
    // Predicated region
    $region46: #{fwd.1} parent=1 // pred_check
      _
    $region47: #{fwd.1} parent=1 // pred_check_branch
      %386 = sbr.rel (0) target = $region49
    $region48: #{fwd.1} parent=1 // pred_region
      _
    $region49: #{fwd.1} parent=1 // pred_fallthru
      _
    // Predicated region
    $region50: #{fwd.1} parent=1 // pred_check
      _
    $region51: #{fwd.1} parent=1 // pred_check_branch
      %388 = sbr.rel (0) target = $region53
    $region52: #{fwd.1} parent=1 // pred_region
      _
    $region53: #{fwd.1} parent=1 // pred_fallthru
      _
    %389 = vsyncpa [#allocation3], 1
    %390 = vsyncpa [#allocation5], 1
    %391 = vsyncpa [#allocation8], 1

</llo_original>
